<compile_context>
chip_gen: v5e
topology: v5e:2x2
jax: 0.10.0
libtpu: 0.0.40
codegen_flags: <defaults>
</compile_context>

<pallas_src>
import jax
import jax.numpy as jnp
from jax.experimental import pallas as pl
from jax.experimental.pallas import tpu as pltpu


def _round_up(n, m):
    return ((n + m - 1) // m) * m


def _make_conv2d_kernel(Hp, Wp, kh, kw):
    """Build a kernel over one zero-padded image tile of shape (Hp, Wp)."""

    def kernel(x_ref, w_ref, b_ref, o_ref):
        # x_ref: (Hp, Wp) f32 in VMEM.  w_ref: (kh*kw,) f32 in SMEM.
        # b_ref: (1,) f32 in SMEM.      o_ref: (Hp, Wp) f32 in VMEM.
        xv = x_ref[...]  # load the whole padded tile once

        # Bias folded into the accumulator init (saves a final elementwise add).
        acc = jnp.full((Hp, Wp), b_ref[0], dtype=jnp.float32)

        # Static (unrolled) loop over taps.  Each tap is a cyclic shift of the
        # full tile (XLU rotate -> otherwise-idle vector-extended slot) scaled
        # by a scalar weight (VPU mul+add).  Wrapped rows/cols only pollute
        # the last kh-1 rows / kw-1 cols, which lie outside the valid
        # (OH, OW) region cropped by the wrapper.
        for i in range(kh):
            xi = xv if i == 0 else pltpu.roll(xv, shift=Hp - i, axis=0)
            for j in range(kw):
                xij = xi if j == 0 else pltpu.roll(xi, shift=Wp - j, axis=1)
                acc = acc + xij * w_ref[i * kw + j]

        o_ref[...] = acc  # full-width, lane-dense, unmasked store

    return kernel


def conv2d_pallas_batched(x, weight, bias):
    """Cross-correlate every image in x:(B,H,W) with weight:(kh,kw), + bias."""
    x = jnp.asarray(x, jnp.float32)
    weight = jnp.asarray(weight, jnp.float32)
    bias = jnp.asarray(bias, jnp.float32).reshape((1,))

    B, H, W = x.shape
    kh, kw = weight.shape
    OH, OW = H - kh + 1, W - kw + 1

    # Pad so the (sublane, lane) dims are (8, 128)-aligned -> lane-dense I/O.
    Hp = _round_up(H, 8)
    Wp = _round_up(W, 128)
    xp = jnp.pad(x, ((0, 0), (0, Hp - H), (0, Wp - W)))

    kernel = _make_conv2d_kernel(Hp, Wp, kh, kw)

    out_padded = pl.pallas_call(
        kernel,
        out_shape=jax.ShapeDtypeStruct((B, Hp, Wp), jnp.float32),
        grid=(B,),
        in_specs=[
            pl.BlockSpec((None, Hp, Wp), lambda b: (b, 0, 0)),   # one image/step
            pl.BlockSpec(memory_space=pltpu.MemorySpace.SMEM),   # weight (flat)
            pl.BlockSpec(memory_space=pltpu.MemorySpace.SMEM),   # bias
        ],
        out_specs=pl.BlockSpec((None, Hp, Wp), lambda b: (b, 0, 0)),
        compiler_params=pltpu.CompilerParams(
            dimension_semantics=("parallel",)),
    )(xp, weight.reshape(-1), bias)

    # Crop the valid output region (drops padding + roll wraparound columns).
    return out_padded[:, :OH, :OW]


def conv2d_forward(x2d, weight, bias):
    """Exact module semantics: forward(x) = corr2d(x, weight) + bias, x 2-D."""
    return conv2d_pallas_batched(x2d[None], weight, bias)[0]


def corr2d_ref(x, k):
    """Pure-JAX reference mirroring corr2d() (for correctness checking)."""
    H, W = x.shape
    kh, kw = k.shape
    OH, OW = H - kh + 1, W - kw + 1
    out = jnp.zeros((OH, OW), jnp.float32)
    for i in range(kh):
        for j in range(kw):
            out = out + x[i:i + OH, j:j + OW] * k[i, j]
    return out


if __name__ == "__main__":
    key = jax.random.PRNGKey(0)
    kx, kw_key = jax.random.split(key)

    # Case 1: Conv2D((3, 3)) on a small batch of 16x16 images (batched grid).
    B, H, W = 2, 16, 16
    kernel_size = (3, 3)
    x = jax.random.normal(kx, (B, H, W), dtype=jnp.float32)
    # __init__: weight = torch.rand(kernel_size), bias = torch.zeros(1)
    weight = jax.random.uniform(kw_key, kernel_size, dtype=jnp.float32)
    bias = jnp.zeros((1,), dtype=jnp.float32)

    out = jax.block_until_ready(conv2d_pallas_batched(x, weight, bias))
    assert out.shape == (B, H - kernel_size[0] + 1, W - kernel_size[1] + 1)
    for b in range(B):
        ref = corr2d_ref(x[b], weight) + bias[0]
        assert jnp.allclose(out[b], ref, atol=1e-5, rtol=1e-5)

    # Case 2: the chapter's edge-detection example, K = [[1, -1]], run through
    # the single-image forward (exact module semantics).
    X = jnp.ones((6, 8), jnp.float32).at[:, 2:6].set(0.0)
    K = jnp.array([[1.0, -1.0]], jnp.float32)
    Y = jax.block_until_ready(conv2d_forward(X, K, bias))
    assert Y.shape == (6, 7)
    assert jnp.allclose(Y, corr2d_ref(X, K) + bias[0], atol=1e-5, rtol=1e-5)

    print("KERNEL_OK")
</pallas_src>

<mosaic_0001>
module attributes {stable_mosaic.version = 11 : i64} {
  func.func @kernel(%arg0: i32, %arg1: memref<1x16x128xf32, #tpu.memory_space<vmem>>, %arg2: memref<9xf32, #tpu.memory_space<smem>>, %arg3: memref<1xf32, #tpu.memory_space<smem>>, %arg4: memref<1x16x128xf32, #tpu.memory_space<vmem>>) attributes {dimension_semantics = [#tpu.dimension_semantics<parallel>], iteration_bounds = array<i64: 2>, scalar_prefetch = 0 : i64, scratch_operands = 0 : i64, tpu.core_type = #tpu.core_type<tc>, window_params = [{transform_indices = @transform_0, window_bounds = array<i64: 1, 16, 128>}, {transform_indices = @transform_1, window_bounds = array<i64: 9>}, {transform_indices = @transform_2, window_bounds = array<i64: 1>}, {transform_indices = @transform_3, window_bounds = array<i64: 1, 16, 128>}]} {
    %c0 = arith.constant 0 : index
    %c0_0 = arith.constant 0 : index
    %c0_1 = arith.constant 0 : index
    %0 = vector.load %arg1[%c0, %c0_0, %c0_1] : memref<1x16x128xf32, #tpu.memory_space<vmem>>, vector<1x16x128xf32>
    %1 = vector.shape_cast %0 : vector<1x16x128xf32> to vector<16x128xf32>
    %c0_2 = arith.constant 0 : index
    %2 = memref.load %arg3[%c0_2] : memref<1xf32, #tpu.memory_space<smem>>
    %3 = vector.broadcast %2 : f32 to vector<16x128xf32>
    %c0_3 = arith.constant 0 : index
    %4 = memref.load %arg2[%c0_3] : memref<9xf32, #tpu.memory_space<smem>>
    %5 = vector.broadcast %4 : f32 to vector<16x128xf32>
    %6 = arith.mulf %1, %5 : vector<16x128xf32>
    %7 = arith.addf %3, %6 : vector<16x128xf32>
    %c127_i32 = arith.constant 127 : i32
    %8 = tpu.dynamic_rotate %1 by %c127_i32 dim 1 : vector<16x128xf32>, i32 -> vector<16x128xf32>
    %c1 = arith.constant 1 : index
    %9 = memref.load %arg2[%c1] : memref<9xf32, #tpu.memory_space<smem>>
    %10 = vector.broadcast %9 : f32 to vector<16x128xf32>
    %11 = arith.mulf %8, %10 : vector<16x128xf32>
    %12 = arith.addf %7, %11 : vector<16x128xf32>
    %c126_i32 = arith.constant 126 : i32
    %13 = tpu.dynamic_rotate %1 by %c126_i32 dim 1 : vector<16x128xf32>, i32 -> vector<16x128xf32>
    %c2 = arith.constant 2 : index
    %14 = memref.load %arg2[%c2] : memref<9xf32, #tpu.memory_space<smem>>
    %15 = vector.broadcast %14 : f32 to vector<16x128xf32>
    %16 = arith.mulf %13, %15 : vector<16x128xf32>
    %17 = arith.addf %12, %16 : vector<16x128xf32>
    %c15_i32 = arith.constant 15 : i32
    %18 = tpu.dynamic_rotate %1 by %c15_i32 dim 0 : vector<16x128xf32>, i32 -> vector<16x128xf32>
    %c3 = arith.constant 3 : index
    %19 = memref.load %arg2[%c3] : memref<9xf32, #tpu.memory_space<smem>>
    %20 = vector.broadcast %19 : f32 to vector<16x128xf32>
    %21 = arith.mulf %18, %20 : vector<16x128xf32>
    %22 = arith.addf %17, %21 : vector<16x128xf32>
    %c127_i32_4 = arith.constant 127 : i32
    %23 = tpu.dynamic_rotate %18 by %c127_i32_4 dim 1 : vector<16x128xf32>, i32 -> vector<16x128xf32>
    %c4 = arith.constant 4 : index
    %24 = memref.load %arg2[%c4] : memref<9xf32, #tpu.memory_space<smem>>
    %25 = vector.broadcast %24 : f32 to vector<16x128xf32>
    %26 = arith.mulf %23, %25 : vector<16x128xf32>
    %27 = arith.addf %22, %26 : vector<16x128xf32>
    %c126_i32_5 = arith.constant 126 : i32
    %28 = tpu.dynamic_rotate %18 by %c126_i32_5 dim 1 : vector<16x128xf32>, i32 -> vector<16x128xf32>
    %c5 = arith.constant 5 : index
    %29 = memref.load %arg2[%c5] : memref<9xf32, #tpu.memory_space<smem>>
    %30 = vector.broadcast %29 : f32 to vector<16x128xf32>
    %31 = arith.mulf %28, %30 : vector<16x128xf32>
    %32 = arith.addf %27, %31 : vector<16x128xf32>
    %c14_i32 = arith.constant 14 : i32
    %33 = tpu.dynamic_rotate %1 by %c14_i32 dim 0 : vector<16x128xf32>, i32 -> vector<16x128xf32>
    %c6 = arith.constant 6 : index
    %34 = memref.load %arg2[%c6] : memref<9xf32, #tpu.memory_space<smem>>
    %35 = vector.broadcast %34 : f32 to vector<16x128xf32>
    %36 = arith.mulf %33, %35 : vector<16x128xf32>
    %37 = arith.addf %32, %36 : vector<16x128xf32>
    %c127_i32_6 = arith.constant 127 : i32
    %38 = tpu.dynamic_rotate %33 by %c127_i32_6 dim 1 : vector<16x128xf32>, i32 -> vector<16x128xf32>
    %c7 = arith.constant 7 : index
    %39 = memref.load %arg2[%c7] : memref<9xf32, #tpu.memory_space<smem>>
    %40 = vector.broadcast %39 : f32 to vector<16x128xf32>
    %41 = arith.mulf %38, %40 : vector<16x128xf32>
    %42 = arith.addf %37, %41 : vector<16x128xf32>
    %c126_i32_7 = arith.constant 126 : i32
    %43 = tpu.dynamic_rotate %33 by %c126_i32_7 dim 1 : vector<16x128xf32>, i32 -> vector<16x128xf32>
    %c8 = arith.constant 8 : index
    %44 = memref.load %arg2[%c8] : memref<9xf32, #tpu.memory_space<smem>>
    %45 = vector.broadcast %44 : f32 to vector<16x128xf32>
    %46 = arith.mulf %43, %45 : vector<16x128xf32>
    %47 = arith.addf %42, %46 : vector<16x128xf32>
    %c0_8 = arith.constant 0 : index
    %c0_9 = arith.constant 0 : index
    %c0_10 = arith.constant 0 : index
    %48 = vector.load %arg4[%c0_8, %c0_9, %c0_10] : memref<1x16x128xf32, #tpu.memory_space<vmem>>, vector<1x16x128xf32>
    %49 = vector.shape_cast %48 : vector<1x16x128xf32> to vector<16x128xf32>
    %50 = vector.shape_cast %47 : vector<16x128xf32> to vector<1x16x128xf32>
    tpu.vector_store %arg4[%c0_8, %c0_9, %c0_10], %50 {strides = array<i32>} : memref<1x16x128xf32, #tpu.memory_space<vmem>>, vector<1x16x128xf32>,
    return
  }
  func.func @transform_0(%arg0: i32) -> (i32, i32, i32) {
    %c0_i32 = arith.constant 0 : i32
    %c0_i32_0 = arith.constant 0 : i32
    %c0_i32_1 = arith.constant 0 : i32
    return %arg0, %c0_i32, %c0_i32_0 : i32, i32, i32
  }
  func.func @transform_1(%arg0: i32) -> i32 {
    %c0_i32 = arith.constant 0 : i32
    %c0_i32_0 = arith.constant 0 : i32
    return %c0_i32 : i32
  }
  func.func @transform_2(%arg0: i32) -> i32 {
    %c0_i32 = arith.constant 0 : i32
    %c0_i32_0 = arith.constant 0 : i32
    return %c0_i32 : i32
  }
  func.func @transform_3(%arg0: i32) -> (i32, i32, i32) {
    %c0_i32 = arith.constant 0 : i32
    %c0_i32_0 = arith.constant 0 : i32
    %c0_i32_1 = arith.constant 0 : i32
    return %arg0, %c0_i32, %c0_i32_0 : i32, i32, i32
  }
}

</mosaic_0001>

<llo_original>
// kernel: tpu_custom_call.1
$region0: #{tpu_custom_call.1}
  #allocation0 [shape = 'u32[]', space=smem, size = 0x4, offset = 0x4, fixed_abs, tag = 'smem constant byte address 0x4 - core index']
  #allocation1 [shape = 'u32[72,128]{1,0:T(1,128)}', space=vmem, size = 0x9000, scoped, tag = 'internal scratch']
  #allocation2 [shape = 'f32[1]{0:T(128)S(6)}', space=smem, size = 0x200, scoped, tag = 'scoped memory for tpu_custom_call.1']
  %s0 = inlined_call_operand.hbm [shape: f32[2,16,128], index: 0, kind: input, shape index: {}]
  %s1 = inlined_call_operand.vmem [shape: f32[9], index: 1, kind: input, shape index: {}]
  %s2 = inlined_call_operand.<no memory space> [shape: f32[1], index: 2, kind: input, shape index: {}]
  %s3 = inlined_call_operand.hbm [shape: f32[2,16,128], index: 3, kind: output, shape index: {}]
  %s4 = sld [smem:[#allocation0]]
  $region53: #{tpu_custom_call.1} parent=0
    _
  %s6 = ssub.s32 1, %s4
  %s7 = scalar_select 0, %s6, %s4
  %8 = sst [smem:[#allocation2]] %s2
  $region1: #{tpu_custom_call.1} parent=0
    #allocation3 [shape = 'u8[16384]{0}', space=vmem, size = 0x4000, scoped, tag = 'input window, operand 0']
    #allocation4 [shape = 's32[2]{0}', space=sflag, size = 0x8, scoped, tag = 'scoped memory for tpu_custom_call.1']
    #allocation5 [shape = 's32[2]{0}', space=sflag, size = 0x8, scoped, tag = 'scoped memory for tpu_custom_call.1']
    #allocation6 [shape = 's32[2]{0}', space=sflag, size = 0x8, scoped, tag = 'scoped memory for tpu_custom_call.1']
    #allocation7 [shape = 'u8[512]{0}', space=smem, size = 0x200, scoped, tag = 'input window, operand 1, single buffered']
    #allocation8 [shape = 'u8[16384]{0}', space=vmem, size = 0x4000, scoped, tag = 'output window, operand 0']
    %9 = vsyncpa [#allocation4], 0
    %s10 = scalar_lea.sflag [#allocation4], 1
    %11 = vsyncpa %s10, 0
    %12 = vsyncpa [#allocation6], 0
    %13 = vsyncpa [#allocation5], 0
    %s14 = scalar_lea.sflag [#allocation5], 1
    %15 = vsyncpa %s14, 0
    loop: start=0, step=1, limit=4
    $region2: #{tpu_custom_call.1} parent=1 // loop_pre_header
      _
    $region3: #{tpu_custom_call.1} parent=1 // loop_header
      %s17 = sphi 0, %s21
      %p18 = scmp.ge.s32.totalorder %s17, 4
      %s27 = sphi 0, %s29
      %s30 = sphi 0, %s27
      %s31 = sphi 0, %s30
      %s47 = sphi 0, %s31
      %s51 = sphi 0, %s51
      %s53 = sphi 0, %s51
      %s54 = sphi 0, %s53
      %s68 = sphi 0, %s54
      %s72 = sphi 0, %s72
      %s74 = sphi 0, %s72
      %s75 = sphi 0, %s74
      %s89 = sphi 0, %s75
      %s95 = sphi 0, %s97
      %s98 = sphi 0, %s95
      %s99 = sphi 0, %s98
      %s115 = sphi 0, %s99
    $region4: #{tpu_custom_call.1} parent=1 // loop_header_branch
      %20 = sbr.rel (%p18) target = $region8
    $region5: #{tpu_custom_call.1} parent=1 // loop_body
      %s22 = ssub.s32 %s17, 1
      %s23 = ssub.s32 %s17, 2
      %s24 = sadd.s32 %s17, 1
      %s25 = ssub.s32 %s17, %s24
      %p26 = scmp.eq.s32.totalorder %s25, 0
      %s28 = sadd.s32 %s27, 1
      %s29 = scalar_select %p26, %s27, %s28
      %p32 = pneg %p26
      %p33 = scmp.eq.s32.totalorder %s17, 1
      %p34 = por %p32, %p33
      %p35 = scmp.ne.s32.totalorder %s27, %s30
      %p36 = scmp.eq.s32.totalorder %s17, 0
      %p37 = por %p35, %p36
      %p38 = scmp.ne.s32.totalorder %s27, %s30
      %p39 = scmp.eq.s32.totalorder %s22, 1
      %p40 = por %p38, %p39
      %p41 = scmp.ne.s32.totalorder %s30, %s31
      %p42 = scmp.eq.s32.totalorder %s22, 0
      %p43 = por %p41, %p42
      %p44 = scmp.ne.s32.totalorder %s30, %s31
      %p45 = scmp.eq.s32.totalorder %s23, 1
      %p46 = por %p44, %p45
      %p48 = scmp.ne.s32.totalorder %s31, %s47
      %p49 = scmp.eq.s32.totalorder %s23, 0
      %p50 = por %p48, %p49
      %s52 = sadd.s32 %s51, 1
      %p55 = scmp.eq.s32.totalorder %s17, 1
      %p56 = scmp.ne.s32.totalorder %s51, %s53
      %p57 = scmp.eq.s32.totalorder %s17, 0
      %p58 = por %p56, %p57
      %p59 = scmp.ne.s32.totalorder %s51, %s53
      %p60 = scmp.eq.s32.totalorder %s22, 1
      %p61 = por %p59, %p60
      %p62 = scmp.ne.s32.totalorder %s53, %s54
      %p63 = scmp.eq.s32.totalorder %s22, 0
      %p64 = por %p62, %p63
      %p65 = scmp.ne.s32.totalorder %s53, %s54
      %p66 = scmp.eq.s32.totalorder %s23, 1
      %p67 = por %p65, %p66
      %p69 = scmp.ne.s32.totalorder %s54, %s68
      %p70 = scmp.eq.s32.totalorder %s23, 0
      %p71 = por %p69, %p70
      %s73 = sadd.s32 %s72, 1
      %p76 = scmp.eq.s32.totalorder %s17, 1
      %p77 = scmp.ne.s32.totalorder %s72, %s74
      %p78 = scmp.eq.s32.totalorder %s17, 0
      %p79 = por %p77, %p78
      %p80 = scmp.ne.s32.totalorder %s72, %s74
      %p81 = scmp.eq.s32.totalorder %s22, 1
      %p82 = por %p80, %p81
      %p83 = scmp.ne.s32.totalorder %s74, %s75
      %p84 = scmp.eq.s32.totalorder %s22, 0
      %p85 = por %p83, %p84
      %p86 = scmp.ne.s32.totalorder %s74, %s75
      %p87 = scmp.eq.s32.totalorder %s23, 1
      %p88 = por %p86, %p87
      %p90 = scmp.ne.s32.totalorder %s75, %s89
      %p91 = scmp.eq.s32.totalorder %s23, 0
      %p92 = por %p90, %p91
      %s93 = ssub.s32 %s17, %s24
      %p94 = scmp.eq.s32.totalorder %s93, 0
      %s96 = sadd.s32 %s95, 1
      %s97 = scalar_select %p94, %s95, %s96
      %p100 = pneg %p94
      %p101 = scmp.eq.s32.totalorder %s17, 1
      %p102 = por %p100, %p101
      %p103 = scmp.ne.s32.totalorder %s95, %s98
      %p104 = scmp.eq.s32.totalorder %s17, 0
      %p105 = por %p103, %p104
      %p106 = scmp.ne.s32.totalorder %s95, %s98
      %p107 = scmp.eq.s32.totalorder %s22, 1
      %p108 = por %p106, %p107
      %p109 = scmp.ne.s32.totalorder %s98, %s99
      %p110 = scmp.eq.s32.totalorder %s22, 0
      %p111 = por %p109, %p110
      %p112 = scmp.ne.s32.totalorder %s98, %s99
      %p113 = scmp.eq.s32.totalorder %s23, 1
      %p114 = por %p112, %p113
      %p116 = scmp.ne.s32.totalorder %s99, %s115
      %p117 = scmp.eq.s32.totalorder %s23, 0
      %p118 = por %p116, %p117
      %p119 = scmp.le.s32.totalorder 1, %s17
      %p120 = scmp.lt.s32.totalorder %s17, 3
      %p121 = pnand %p119, %p120
      %p122 = pneg %p121
      // Predicated region
      $region9: #{tpu_custom_call.1} parent=5 // pred_check
        _
      $region10: #{tpu_custom_call.1} parent=5 // pred_check_branch
        %124 = sbr.rel (%p121) target = $region12
      $region11: #{tpu_custom_call.1} parent=5 // pred_region
        %s125 = ssub.s32 %s17, 1
        // Predicated region
        $region13: #{tpu_custom_call.1} parent=11 // pred_check
          %p126 = pneg %p64
        $region14: #{tpu_custom_call.1} parent=11 // pred_check_branch
          %128 = sbr.rel (%p126) target = $region16
        $region15: #{tpu_custom_call.1} parent=11 // pred_region
          %130 = vsyncadd [#allocation6], 0
          %s132 = sshll.u32 %s1, 4
          %s133 = int_to_ptr.vmem [resolvable:$true] %s132
          %135 = dma.vmem_to_smem %s133, 16, [#allocation7], [#allocation6]
        $region16: #{tpu_custom_call.1} parent=11 // pred_fallthru
          _
        // Predicated region
        $region17: #{tpu_custom_call.1} parent=11 // pred_check
          %p136 = pneg %p85
        $region18: #{tpu_custom_call.1} parent=11 // pred_check_branch
          %138 = sbr.rel (%p136) target = $region20
        $region19: #{tpu_custom_call.1} parent=11 // pred_region
          _
        $region20: #{tpu_custom_call.1} parent=11 // pred_fallthru
          _
      $region12: #{tpu_custom_call.1} parent=5 // pred_fallthru
        _
      %p139 = scmp.lt.s32.totalorder %s17, 2
      // Predicated region
      $region21: #{tpu_custom_call.1} parent=5 // pred_check
        %p140 = pneg %p139
      $region22: #{tpu_custom_call.1} parent=5 // pred_check_branch
        %142 = sbr.rel (%p140) target = $region24
      $region23: #{tpu_custom_call.1} parent=5 // pred_region
        // Predicated region
        $region25: #{tpu_custom_call.1} parent=23 // pred_check
          %p143 = pneg %p37
        $region26: #{tpu_custom_call.1} parent=23 // pred_check_branch
          %145 = sbr.rel (%p143) target = $region28
        $region27: #{tpu_custom_call.1} parent=23 // pred_region
          %s146 = sand.u32 %s27, 1
          %s147 = scalar_lea.sflag [#allocation4], %s146
          %s148 = sand.u32 %s27, 1
          %s149 = smul.addr %s148, 16
          %s150 = scalar_lea.vmem [#allocation3], %s149
          %152 = vsyncadd %s147, 0
          %s153 = smul.addr %s17, 2
          %s154 = smul.addr %s153, 8
          %s155 = scalar_lea.hbm %s0, %s154
          %s156 = sshll.u32 %s155, 4
          %s157 = int_to_ptr.hbm [resolvable:$true] %s156
          %s158 = sshll.u32 %s150, 4
          %s159 = int_to_ptr.vmem [resolvable:$true] %s158
          %164 = dma.hbm_to_vmem [thread:$0]  %s157, 256, %s159, %s147, 128, 128, 8
        $region28: #{tpu_custom_call.1} parent=23 // pred_fallthru
          _
      $region24: #{tpu_custom_call.1} parent=5 // pred_fallthru
        _
      %p165 = scmp.le.s32.totalorder 1, %s17
      %p166 = scmp.lt.s32.totalorder %s17, 3
      %p167 = pnand %p165, %p166
      %p168 = pneg %p167
      // Predicated region
      $region29: #{tpu_custom_call.1} parent=5 // pred_check
        _
      $region30: #{tpu_custom_call.1} parent=5 // pred_check_branch
        %170 = sbr.rel (%p167) target = $region32
      $region31: #{tpu_custom_call.1} parent=5 // pred_region
        %s171 = ssub.s32 %s17, 1
        %s172 = sand.u32 %s30, 1
        %s173 = scalar_lea.sflag [#allocation4], %s172
        %s174 = sand.u32 %s30, 1
        %s175 = smul.addr %s174, 16
        %s176 = scalar_lea.vmem [#allocation3], %s175
        // Predicated region
        $region33: #{tpu_custom_call.1} parent=31 // pred_check
          %p177 = pneg %p43
        $region34: #{tpu_custom_call.1} parent=31 // pred_check_branch
          %179 = sbr.rel (%p177) target = $region36
        $region35: #{tpu_custom_call.1} parent=31 // pred_region
          %181 = dma.done %s173, 256
        $region36: #{tpu_custom_call.1} parent=31 // pred_fallthru
          _
        // Predicated region
        $region37: #{tpu_custom_call.1} parent=31 // pred_check
          %p182 = pneg %p64
        $region38: #{tpu_custom_call.1} parent=31 // pred_check_branch
          %184 = sbr.rel (%p182) target = $region40
        $region39: #{tpu_custom_call.1} parent=31 // pred_region
          %186 = dma.done [#allocation6], 16
        $region40: #{tpu_custom_call.1} parent=31 // pred_fallthru
          _
        %187 = sfence
        %s188 = sand.u32 %s30, 1
        %s189 = scalar_lea.sflag [#allocation4], %s188
        %s190 = sand.u32 %s30, 1
        %s191 = smul.addr %s190, 16
        %s192 = scalar_lea.vmem [#allocation3], %s191
        %p193 = pneg %p43
        %p194 = pneg %p40
        %p195 = pneg %p64
        %p196 = pneg %p61
        %p197 = pneg %p85
        %p198 = pneg %p82
        %p199 = pneg %p111
        %p200 = pneg %p108
        %s201 = sand.u32 %s98, 1
        %s202 = scalar_lea.sflag [#allocation5], %s201
        %s203 = sand.u32 %s98, 1
        %s204 = smul.addr %s203, 16
        %s205 = scalar_lea.vmem [#allocation8], %s204
        %v206 = vld [vmem:[%s176] sm:$0xff]
        %v207 = vld [vmem:[%s176 + $0x8] sm:$0xff]
        %s208 = sld [smem:[#allocation2]]
        %v209 = vstv %s208
        %s210 = sld [smem:[#allocation7]]
        %v211 = vstv %s210
        %v212 = vmul.f32 %v206, %v211
        %v213 = vmul.f32 %v207, %v211
        %v214 = vadd.f32 %v209, %v212
        %v215 = vadd.f32 %v209, %v213
        %216 = vrot.lane.b32.xlu0 %v206, 127
        %v217 = vpop.permute.xlu0 %216
        %218 = vrot.lane.b32.xlu0 %v207, 127
        %v219 = vpop.permute.xlu0 %218
        %s220 = sld [smem:[#allocation7 + $0x1]]
        %v221 = vstv %s220
        %v222 = vmul.f32 %v217, %v221
        %v223 = vmul.f32 %v219, %v221
        %v224 = vadd.f32 %v214, %v222
        %v225 = vadd.f32 %v215, %v223
        %226 = vrot.lane.b32.xlu0 %v206, 126
        %v227 = vpop.permute.xlu0 %226
        %228 = vrot.lane.b32.xlu0 %v207, 126
        %v229 = vpop.permute.xlu0 %228
        %s230 = sld [smem:[#allocation7 + $0x2]]
        %v231 = vstv %s230
        %v232 = vmul.f32 %v227, %v231
        %v233 = vmul.f32 %v229, %v231
        %v234 = vadd.f32 %v224, %v232
        %v235 = vadd.f32 %v225, %v233
        %v236 = vrot.slane %v206, 1
        %v237 = vrot.slane %v207, 1
        %v238 = vlaneseq
        %v239 = vshrl.u32 %v238, 7
        %vm240 = vcmp.lt.s32.totalorder %v239, 7
        %v241 = vsel %vm240, %v236, %v237
        %v242 = vsel %vm240, %v237, %v236
        %s243 = sld [smem:[#allocation7 + $0x3]]
        %v244 = vstv %s243
        %v245 = vmul.f32 %v241, %v244
        %v246 = vmul.f32 %v242, %v244
        %v247 = vadd.f32 %v234, %v245
        %v248 = vadd.f32 %v235, %v246
        %249 = vrot.lane.b32.xlu0 %v241, 127
        %v250 = vpop.permute.xlu0 %249
        %251 = vrot.lane.b32.xlu0 %v242, 127
        %v252 = vpop.permute.xlu0 %251
        %s253 = sld [smem:[#allocation7 + $0x4]]
        %v254 = vstv %s253
        %v255 = vmul.f32 %v250, %v254
        %v256 = vmul.f32 %v252, %v254
        %v257 = vadd.f32 %v247, %v255
        %v258 = vadd.f32 %v248, %v256
        %259 = vrot.lane.b32.xlu0 %v241, 126
        %v260 = vpop.permute.xlu0 %259
        %261 = vrot.lane.b32.xlu0 %v242, 126
        %v262 = vpop.permute.xlu0 %261
        %s263 = sld [smem:[#allocation7 + $0x5]]
        %v264 = vstv %s263
        %v265 = vmul.f32 %v260, %v264
        %v266 = vmul.f32 %v262, %v264
        %v267 = vadd.f32 %v257, %v265
        %v268 = vadd.f32 %v258, %v266
        %v269 = vrot.slane %v206, 2
        %v270 = vrot.slane %v207, 2
        %vm271 = vcmp.lt.s32.totalorder %v239, 6
        %v272 = vsel %vm271, %v269, %v270
        %v273 = vsel %vm271, %v270, %v269
        %s274 = sld [smem:[#allocation7 + $0x6]]
        %v275 = vstv %s274
        %v276 = vmul.f32 %v272, %v275
        %v277 = vmul.f32 %v273, %v275
        %v278 = vadd.f32 %v267, %v276
        %v279 = vadd.f32 %v268, %v277
        %280 = vrot.lane.b32.xlu0 %v272, 127
        %v281 = vpop.permute.xlu0 %280
        %282 = vrot.lane.b32.xlu0 %v273, 127
        %v283 = vpop.permute.xlu0 %282
        %s284 = sld [smem:[#allocation7 + $0x7]]
        %v285 = vstv %s284
        %v286 = vmul.f32 %v281, %v285
        %v287 = vmul.f32 %v283, %v285
        %v288 = vadd.f32 %v278, %v286
        %v289 = vadd.f32 %v279, %v287
        %290 = vrot.lane.b32.xlu0 %v272, 126
        %v291 = vpop.permute.xlu0 %290
        %292 = vrot.lane.b32.xlu0 %v273, 126
        %v293 = vpop.permute.xlu0 %292
        %s294 = sld [smem:[#allocation7 + $0x8]]
        %v295 = vstv %s294
        %v296 = vmul.f32 %v291, %v295
        %v297 = vmul.f32 %v293, %v295
        %v298 = vadd.f32 %v288, %v296
        %v299 = vadd.f32 %v289, %v297
        %300 = vst [vmem:[%s205] sm:$0xff] %v298
        %301 = vst [vmem:[%s205 + $0x8] sm:$0xff] %v299
        %s302 = sand.u32 %s98, 1
        %s303 = scalar_lea.sflag [#allocation5], %s302
        %s304 = sand.u32 %s98, 1
        %s305 = smul.addr %s304, 16
        %s306 = scalar_lea.vmem [#allocation8], %s305
        // Predicated region
        $region41: #{tpu_custom_call.1} parent=31 // pred_check
          %p307 = pneg %p108
        $region42: #{tpu_custom_call.1} parent=31 // pred_check_branch
          %309 = sbr.rel (%p307) target = $region44
        $region43: #{tpu_custom_call.1} parent=31 // pred_region
          %311 = vsyncadd %s303, 0
          %s312 = smul.addr %s22, 2
          %s313 = smul.addr %s312, 8
          %s314 = scalar_lea.hbm %s3, %s313
          %s315 = sshll.u32 %s306, 4
          %s316 = int_to_ptr.vmem [resolvable:$true] %s315
          %s317 = sshll.u32 %s314, 4
          %s318 = int_to_ptr.hbm [resolvable:$true] %s317
          %323 = dma.vmem_to_hbm [thread:$0]  %s316, 256, %s318, %s303, 128, 128, 8
        $region44: #{tpu_custom_call.1} parent=31 // pred_fallthru
          _
      $region32: #{tpu_custom_call.1} parent=5 // pred_fallthru
        _
      %p324 = scmp.le.s32.totalorder 2, %s17
      // Predicated region
      $region45: #{tpu_custom_call.1} parent=5 // pred_check
        %p325 = pneg %p324
      $region46: #{tpu_custom_call.1} parent=5 // pred_check_branch
        %327 = sbr.rel (%p325) target = $region48
      $region47: #{tpu_custom_call.1} parent=5 // pred_region
        %s328 = ssub.s32 %s17, 2
        // Predicated region
        $region49: #{tpu_custom_call.1} parent=47 // pred_check
          %p329 = pneg %p114
        $region50: #{tpu_custom_call.1} parent=47 // pred_check_branch
          %331 = sbr.rel (%p329) target = $region52
        $region51: #{tpu_custom_call.1} parent=47 // pred_region
          %s332 = sand.u32 %s99, 1
          %s333 = scalar_lea.sflag [#allocation5], %s332
          %s334 = sand.u32 %s99, 1
          %s335 = smul.addr %s334, 16
          %s336 = scalar_lea.vmem [#allocation8], %s335
          %338 = dma.done %s333, 256
        $region52: #{tpu_custom_call.1} parent=47 // pred_fallthru
          _
      $region48: #{tpu_custom_call.1} parent=5 // pred_fallthru
        _
    $region6: #{tpu_custom_call.1} parent=1 // loop_footer
      %s21 = sadd.s32 1, %s17
    $region7: #{tpu_custom_call.1} parent=1 // loop_footer_branch
      %16 = sbr.rel target = $region3
    $region8: #{tpu_custom_call.1} parent=1 // loop_exit
      _
    %339 = vsyncpa [#allocation4], 1
    %s340 = scalar_lea.sflag [#allocation4], 1
    %341 = vsyncpa %s340, 1
    %342 = vsyncpa [#allocation5], 1
    %s343 = scalar_lea.sflag [#allocation5], 1
    %344 = vsyncpa %s343, 1
    %345 = vsyncpa [#allocation6], 1
    %s346 = scalar_lea.sflag [#allocation6], 1
    %347 = vsyncpa %s346, 1

</llo_original>
